<compile_context>
chip_gen: v7x
topology: tpu7x:2x2x1
jax: 0.10.0
libtpu: 0.0.40
codegen_flags: <defaults>
</compile_context>

<pallas_src>
import functools

import jax
import jax.numpy as jnp
from jax.experimental import pallas as pl
from jax.experimental.pallas import tpu as pltpu


def _round_up(x, m):
    return (x + m - 1) // m * m


def _conv1d_kernel(xp_ref, w_ref, b_ref, o_ref, *, kernel_size):
    """One (batch, time-tile) grid step: im2col + one MXU matmul."""
    j = pl.program_id(1)
    tile_t = o_ref.shape[1]
    start = pl.multiple_of(j * tile_t, 8)              # tile_t is a multiple of 8

    # Gather the K shifted windows and fuse them into one lane-dense matmul.
    cols = jnp.concatenate(
        [xp_ref[0, pl.ds(start + k, tile_t), :] for k in range(kernel_size)],
        axis=-1)                                        # (tile_t, K*C_in)
    acc = jnp.dot(cols, w_ref[...], preferred_element_type=jnp.float32)
    o_ref[0] = (acc + b_ref[...]).astype(o_ref.dtype)


def transpose_conv1d(x, weight, bias, *, padding=1, tile_t=None):
    """Pallas equivalent of TransposeConv1d.forward.

    x:      (B, T, C_in)      channels-last activations
    weight: (C_out, C_in, K)  PyTorch Conv1d weight layout
    bias:   (C_out,)
    """
    B, T, C_in = x.shape
    C_out, _, K = weight.shape
    T_out = T + 2 * padding - K + 1

    # ---- time tiling (sublane-aligned; extra rows are sliced off at the end)
    if tile_t is None:
        tile_t = min(_round_up(T_out, 8), 256)
    tile_t = _round_up(tile_t, 8)
    n_tiles = pl.cdiv(T_out, tile_t)
    T_out_pad = n_tiles * tile_t

    # ---- host-side zero padding: conv pad + enough rows for the last tile
    rows_needed = T_out_pad + K - 1
    xp = jnp.pad(x, ((0, 0), (padding, rows_needed - T - padding), (0, 0)))

    # ---- weights in im2col layout: (K, C_in, C_out) -> (K*C_in, C_out)
    w_mat = jnp.transpose(weight, (2, 1, 0)).reshape(K * C_in, C_out)
    b_row = bias.reshape(1, C_out).astype(jnp.float32)

    # ---- explicit VMEM budget (double buffers + im2col scratch + headroom)
    itemsize = x.dtype.itemsize
    est = 2 * (rows_needed * C_in * itemsize                 # input slab
               + K * C_in * C_out * w_mat.dtype.itemsize     # weights
               + tile_t * C_out * itemsize)                  # output tile
    est += tile_t * K * C_in * 4 + (2 << 20)                 # im2col cols + slack
    vmem_limit = int(min(max(est, 8 << 20), 48 << 20))

    out = pl.pallas_call(
        functools.partial(_conv1d_kernel, kernel_size=K),
        out_shape=jax.ShapeDtypeStruct((B, T_out_pad, C_out), x.dtype),
        grid=(B, n_tiles),
        in_specs=[
            # Full padded slab per batch; the block index ignores the tile axis
            # so the slab stays VMEM-resident across all time tiles of a batch.
            pl.BlockSpec((1, rows_needed, C_in), lambda b, j: (b, 0, 0)),
            pl.BlockSpec((K * C_in, C_out), lambda b, j: (0, 0)),
            pl.BlockSpec((1, C_out), lambda b, j: (0, 0)),
        ],
        out_specs=pl.BlockSpec((1, tile_t, C_out), lambda b, j: (b, j, 0)),
        compiler_params=pltpu.CompilerParams(
            dimension_semantics=("parallel", "parallel"),
            vmem_limit_bytes=vmem_limit),
    )(xp, w_mat, b_row)

    return out[:, :T_out, :]


# ------------------------------ pure-JAX reference ------------------------- #
def reference_conv1d(x, weight, bias, *, padding=1):
    B, T, C_in = x.shape
    C_out, _, K = weight.shape
    T_out = T + 2 * padding - K + 1
    xp = jnp.pad(x, ((0, 0), (padding, padding), (0, 0)))
    w = jnp.transpose(weight, (2, 1, 0))                 # (K, C_in, C_out)
    out = jnp.zeros((B, T_out, C_out), jnp.float32) + bias[None, None, :]
    for k in range(K):
        out = out + jnp.einsum("btc,co->bto", xp[:, k:k + T_out, :], w[k])
    return out


if __name__ == "__main__":
    B, T, C_in, C_out, K, P = 2, 20, 32, 48, 3, 1
    key = jax.random.PRNGKey(0)
    kx, kw, kb = jax.random.split(key, 3)

    x = jax.random.normal(kx, (B, T, C_in), jnp.float32)
    weight = 0.05 * jax.random.normal(kw, (C_out, C_in, K), jnp.float32)  # torch layout
    bias = 0.05 * jax.random.normal(kb, (C_out,), jnp.float32)

    # Small time-tile to exercise the multi-tile path (halos + ragged last tile).
    out = transpose_conv1d(x, weight, bias, padding=P, tile_t=8)
    out = jax.block_until_ready(out)

    ref = reference_conv1d(x, weight, bias, padding=P)
    assert out.shape == ref.shape == (B, T + 2 * P - K + 1, C_out)
    assert bool(jnp.all(jnp.isfinite(out)))
    err = float(jnp.max(jnp.abs(out - ref)))
    assert err < 1e-3, err
    print("KERNEL_OK")
</pallas_src>

<mosaic_0001>
module attributes {stable_mosaic.version = 11 : i64} {
  func.func @_conv1d_kernel(%arg0: i32, %arg1: i32, %arg2: memref<1x26x32xf32, #tpu.memory_space<vmem>>, %arg3: memref<96x48xf32, #tpu.memory_space<vmem>>, %arg4: memref<1x48xf32, #tpu.memory_space<vmem>>, %arg5: memref<1x8x48xf32, #tpu.memory_space<vmem>>) attributes {dimension_semantics = [#tpu.dimension_semantics<parallel>, #tpu.dimension_semantics<parallel>], iteration_bounds = array<i64: 2, 3>, scalar_prefetch = 0 : i64, scratch_operands = 0 : i64, tpu.core_type = #tpu.core_type<tc>, window_params = [{transform_indices = @transform_0, window_bounds = array<i64: 1, 26, 32>}, {pipeline_mode = #tpu.pipeline_mode<synchronous>, transform_indices = @transform_1, window_bounds = array<i64: 96, 48>}, {pipeline_mode = #tpu.pipeline_mode<synchronous>, transform_indices = @transform_2, window_bounds = array<i64: 1, 48>}, {transform_indices = @transform_3, window_bounds = array<i64: 1, 8, 48>}]} {
    %c8_i32 = arith.constant 8 : i32
    %0 = arith.muli %arg1, %c8_i32 : i32
    %1 = tpu.assume_multiple %0, 8 : i32
    %c0_i32 = arith.constant 0 : i32
    %2 = arith.addi %1, %c0_i32 : i32
    %c0 = arith.constant 0 : index
    %3 = arith.index_cast %2 : i32 to index
    %c0_0 = arith.constant 0 : index
    %4 = vector.load %arg2[%c0, %3, %c0_0] : memref<1x26x32xf32, #tpu.memory_space<vmem>>, vector<1x8x32xf32>
    %5 = vector.shape_cast %4 : vector<1x8x32xf32> to vector<8x32xf32>
    %c1_i32 = arith.constant 1 : i32
    %6 = arith.addi %1, %c1_i32 : i32
    %c0_1 = arith.constant 0 : index
    %7 = arith.index_cast %6 : i32 to index
    %c0_2 = arith.constant 0 : index
    %8 = vector.load %arg2[%c0_1, %7, %c0_2] : memref<1x26x32xf32, #tpu.memory_space<vmem>>, vector<1x8x32xf32>
    %9 = vector.shape_cast %8 : vector<1x8x32xf32> to vector<8x32xf32>
    %c2_i32 = arith.constant 2 : i32
    %10 = arith.addi %1, %c2_i32 : i32
    %c0_3 = arith.constant 0 : index
    %11 = arith.index_cast %10 : i32 to index
    %c0_4 = arith.constant 0 : index
    %12 = vector.load %arg2[%c0_3, %11, %c0_4] : memref<1x26x32xf32, #tpu.memory_space<vmem>>, vector<1x8x32xf32>
    %13 = vector.shape_cast %12 : vector<1x8x32xf32> to vector<8x32xf32>
    %14 = tpu.concatenate %5, %9, %13 in 1 : vector<8x32xf32>, vector<8x32xf32>, vector<8x32xf32> -> vector<8x96xf32>
    %c0_5 = arith.constant 0 : index
    %c0_6 = arith.constant 0 : index
    %15 = vector.load %arg3[%c0_5, %c0_6] : memref<96x48xf32, #tpu.memory_space<vmem>>, vector<96x48xf32>
    %cst = arith.constant dense<0.000000e+00> : vector<8x48xf32>
    %16 = tpu.matmul %14, %15, %cst {dimension_numbers = #tpu.dot_dimension_numbers<[1], [0], [0], [1], [0, 0, 1, 1], [], []>} : vector<8x96xf32>, vector<96x48xf32>, vector<8x48xf32> -> vector<8x48xf32>
    %c0_7 = arith.constant 0 : index
    %c0_8 = arith.constant 0 : index
    %17 = vector.load %arg4[%c0_7, %c0_8] : memref<1x48xf32, #tpu.memory_space<vmem>>, vector<1x48xf32>
    %18 = vector.broadcast %17 : vector<1x48xf32> to vector<8x48xf32>
    %19 = arith.addf %16, %18 : vector<8x48xf32>
    %c0_9 = arith.constant 0 : index
    %c0_10 = arith.constant 0 : index
    %c0_11 = arith.constant 0 : index
    %20 = vector.load %arg5[%c0_9, %c0_10, %c0_11] : memref<1x8x48xf32, #tpu.memory_space<vmem>>, vector<1x8x48xf32>
    %21 = vector.shape_cast %20 : vector<1x8x48xf32> to vector<8x48xf32>
    %22 = vector.shape_cast %19 : vector<8x48xf32> to vector<1x8x48xf32>
    tpu.vector_store %arg5[%c0_9, %c0_10, %c0_11], %22 {strides = array<i32>} : memref<1x8x48xf32, #tpu.memory_space<vmem>>, vector<1x8x48xf32>,
    return
  }
  func.func @transform_0(%arg0: i32, %arg1: i32) -> (i32, i32, i32) {
    %c0_i32 = arith.constant 0 : i32
    %c0_i32_0 = arith.constant 0 : i32
    %c0_i32_1 = arith.constant 0 : i32
    return %arg0, %c0_i32, %c0_i32_0 : i32, i32, i32
  }
  func.func @transform_1(%arg0: i32, %arg1: i32) -> (i32, i32) {
    %c0_i32 = arith.constant 0 : i32
    %c0_i32_0 = arith.constant 0 : i32
    %c0_i32_1 = arith.constant 0 : i32
    return %c0_i32, %c0_i32_0 : i32, i32
  }
  func.func @transform_2(%arg0: i32, %arg1: i32) -> (i32, i32) {
    %c0_i32 = arith.constant 0 : i32
    %c0_i32_0 = arith.constant 0 : i32
    %c0_i32_1 = arith.constant 0 : i32
    return %c0_i32, %c0_i32_0 : i32, i32
  }
  func.func @transform_3(%arg0: i32, %arg1: i32) -> (i32, i32, i32) {
    %c0_i32 = arith.constant 0 : i32
    %c0_i32_0 = arith.constant 0 : i32
    return %arg0, %arg1, %c0_i32 : i32, i32, i32
  }
}

</mosaic_0001>

<llo_original>
// kernel: tpu_custom_call.1
$region0: #{tpu_custom_call.1}
  #allocation0 [shape = 'u32[]', space=smem, size = 0x4, offset = 0x4, fixed_abs, tag = 'smem constant byte address 0x4 - core index']
  #allocation1 [shape = 'u32[144,128]{1,0:T(1,128)}', space=vmem, size = 0x12000, scoped, tag = 'internal scratch']
  %s0 = inlined_call_operand.vmem [shape: f32[2,26,32], index: 0, kind: input, shape index: {}]
  %s1 = inlined_call_operand.vmem [shape: f32[96,48], index: 1, kind: input, shape index: {}]
  %s2 = inlined_call_operand.vmem [shape: f32[1,48], index: 2, kind: input, shape index: {}]
  %s3 = inlined_call_operand.hbm [shape: f32[2,24,48], index: 3, kind: output, shape index: {}]
  %s4 = sld [smem:[#allocation0]]
  $region45: #{tpu_custom_call.1} parent=0
    _
  %s6 = ssub.s32 1, %s4
  %s7 = scalar_select 0, %s6, %s4
  $region1: #{tpu_custom_call.1} parent=0
    #allocation2 [shape = 'u8[8192]{0}', space=vmem, size = 0x2000, scoped, tag = 'output window, operand 0']
    #allocation3 [shape = 's32[2]{0}', space=sflag, size = 0x8, scoped, tag = 'scoped memory for tpu_custom_call.1']
    %8 = vsyncpa [#allocation3], 0
    %s9 = scalar_lea.sflag [#allocation3], 1
    %10 = vsyncpa %s9, 0
    loop: start=0, step=1, limit=8
    $region2: #{tpu_custom_call.1} parent=1 // loop_pre_header
      _
    $region3: #{tpu_custom_call.1} parent=1 // loop_header
      %s12 = sphi 0, %s16
      %p13 = scmp.ge.s32.totalorder %s12, 8
      %s19 = sphi 0, %s31
      %s20 = sphi 0, %s27
      %s21 = sphi 0, %s19
      %s22 = sphi 0, %s20
      %s23 = sphi 0, %s21
      %s24 = sphi 0, %s22
      %s34 = sphi 0, %s36
      %s37 = sphi 0, %s34
      %s38 = sphi 0, %s37
      %s54 = sphi 0, %s38
      %s58 = sphi 0, %s58
      %s60 = sphi 0, %s58
      %s61 = sphi 0, %s60
      %s75 = sphi 0, %s61
      %s79 = sphi 0, %s79
      %s81 = sphi 0, %s79
      %s82 = sphi 0, %s81
      %s96 = sphi 0, %s82
      %s104 = sphi 0, %s106
      %s107 = sphi 0, %s104
      %s108 = sphi 0, %s107
      %s124 = sphi 0, %s108
    $region4: #{tpu_custom_call.1} parent=1 // loop_header_branch
      %15 = sbr.rel (%p13) target = $region8
    $region5: #{tpu_custom_call.1} parent=1 // loop_body
      %s17 = ssub.s32 %s12, 1
      %s18 = ssub.s32 %s12, 2
      %s25 = sadd.s32 1, %s20
      %p26 = scmp.ge.s32.totalorder %s25, 3
      %s27 = scalar_select %p26, 0, %s25
      %s28 = sadd.s32 1, %s19
      %s29 = scalar_select %p26, %s28, %s19
      %p30 = scmp.ge.s32.totalorder %s29, 2
      %s31 = scalar_select %p30, 0, %s29
      %s32 = ssub.s32 %s19, %s31
      %p33 = scmp.eq.s32.totalorder %s32, 0
      %s35 = sadd.s32 %s34, 1
      %s36 = scalar_select %p33, %s34, %s35
      %p39 = pneg %p33
      %p40 = scmp.eq.s32.totalorder %s12, 5
      %p41 = por %p39, %p40
      %p42 = scmp.ne.s32.totalorder %s34, %s37
      %p43 = scmp.eq.s32.totalorder %s12, 0
      %p44 = por %p42, %p43
      %p45 = scmp.ne.s32.totalorder %s34, %s37
      %p46 = scmp.eq.s32.totalorder %s17, 5
      %p47 = por %p45, %p46
      %p48 = scmp.ne.s32.totalorder %s37, %s38
      %p49 = scmp.eq.s32.totalorder %s17, 0
      %p50 = por %p48, %p49
      %p51 = scmp.ne.s32.totalorder %s37, %s38
      %p52 = scmp.eq.s32.totalorder %s18, 5
      %p53 = por %p51, %p52
      %p55 = scmp.ne.s32.totalorder %s38, %s54
      %p56 = scmp.eq.s32.totalorder %s18, 0
      %p57 = por %p55, %p56
      %s59 = sadd.s32 %s58, 1
      %p62 = scmp.eq.s32.totalorder %s12, 5
      %p63 = scmp.ne.s32.totalorder %s58, %s60
      %p64 = scmp.eq.s32.totalorder %s12, 0
      %p65 = por %p63, %p64
      %p66 = scmp.ne.s32.totalorder %s58, %s60
      %p67 = scmp.eq.s32.totalorder %s17, 5
      %p68 = por %p66, %p67
      %p69 = scmp.ne.s32.totalorder %s60, %s61
      %p70 = scmp.eq.s32.totalorder %s17, 0
      %p71 = por %p69, %p70
      %p72 = scmp.ne.s32.totalorder %s60, %s61
      %p73 = scmp.eq.s32.totalorder %s18, 5
      %p74 = por %p72, %p73
      %p76 = scmp.ne.s32.totalorder %s61, %s75
      %p77 = scmp.eq.s32.totalorder %s18, 0
      %p78 = por %p76, %p77
      %s80 = sadd.s32 %s79, 1
      %p83 = scmp.eq.s32.totalorder %s12, 5
      %p84 = scmp.ne.s32.totalorder %s79, %s81
      %p85 = scmp.eq.s32.totalorder %s12, 0
      %p86 = por %p84, %p85
      %p87 = scmp.ne.s32.totalorder %s79, %s81
      %p88 = scmp.eq.s32.totalorder %s17, 5
      %p89 = por %p87, %p88
      %p90 = scmp.ne.s32.totalorder %s81, %s82
      %p91 = scmp.eq.s32.totalorder %s17, 0
      %p92 = por %p90, %p91
      %p93 = scmp.ne.s32.totalorder %s81, %s82
      %p94 = scmp.eq.s32.totalorder %s18, 5
      %p95 = por %p93, %p94
      %p97 = scmp.ne.s32.totalorder %s82, %s96
      %p98 = scmp.eq.s32.totalorder %s18, 0
      %p99 = por %p97, %p98
      %s100 = ssub.s32 %s19, %s31
      %s101 = ssub.s32 %s20, %s27
      %s102 = sor.u32 %s100, %s101
      %p103 = scmp.eq.s32.totalorder %s102, 0
      %s105 = sadd.s32 %s104, 1
      %s106 = scalar_select %p103, %s104, %s105
      %p109 = pneg %p103
      %p110 = scmp.eq.s32.totalorder %s12, 5
      %p111 = por %p109, %p110
      %p112 = scmp.ne.s32.totalorder %s104, %s107
      %p113 = scmp.eq.s32.totalorder %s12, 0
      %p114 = por %p112, %p113
      %p115 = scmp.ne.s32.totalorder %s104, %s107
      %p116 = scmp.eq.s32.totalorder %s17, 5
      %p117 = por %p115, %p116
      %p118 = scmp.ne.s32.totalorder %s107, %s108
      %p119 = scmp.eq.s32.totalorder %s17, 0
      %p120 = por %p118, %p119
      %p121 = scmp.ne.s32.totalorder %s107, %s108
      %p122 = scmp.eq.s32.totalorder %s18, 5
      %p123 = por %p121, %p122
      %p125 = scmp.ne.s32.totalorder %s108, %s124
      %p126 = scmp.eq.s32.totalorder %s18, 0
      %p127 = por %p125, %p126
      %p128 = scmp.le.s32.totalorder 1, %s12
      %p129 = scmp.lt.s32.totalorder %s12, 7
      %p130 = pnand %p128, %p129
      %p131 = pneg %p130
      // Predicated region
      $region9: #{tpu_custom_call.1} parent=5 // pred_check
        _
      $region10: #{tpu_custom_call.1} parent=5 // pred_check_branch
        %133 = sbr.rel (%p130) target = $region12
      $region11: #{tpu_custom_call.1} parent=5 // pred_region
        %s134 = ssub.s32 %s12, 1
        // Predicated region
        $region13: #{tpu_custom_call.1} parent=11 // pred_check
          %p135 = pneg %p71
        $region14: #{tpu_custom_call.1} parent=11 // pred_check_branch
          %137 = sbr.rel (%p135) target = $region16
        $region15: #{tpu_custom_call.1} parent=11 // pred_region
          _
        $region16: #{tpu_custom_call.1} parent=11 // pred_fallthru
          _
        // Predicated region
        $region17: #{tpu_custom_call.1} parent=11 // pred_check
          %p138 = pneg %p92
        $region18: #{tpu_custom_call.1} parent=11 // pred_check_branch
          %140 = sbr.rel (%p138) target = $region20
        $region19: #{tpu_custom_call.1} parent=11 // pred_region
          _
        $region20: #{tpu_custom_call.1} parent=11 // pred_fallthru
          _
      $region12: #{tpu_custom_call.1} parent=5 // pred_fallthru
        _
      %p141 = scmp.lt.s32.totalorder %s12, 6
      // Predicated region
      $region21: #{tpu_custom_call.1} parent=5 // pred_check
        %p142 = pneg %p141
      $region22: #{tpu_custom_call.1} parent=5 // pred_check_branch
        %144 = sbr.rel (%p142) target = $region24
      $region23: #{tpu_custom_call.1} parent=5 // pred_region
        // Predicated region
        $region25: #{tpu_custom_call.1} parent=23 // pred_check
          %p145 = pneg %p44
        $region26: #{tpu_custom_call.1} parent=23 // pred_check_branch
          %147 = sbr.rel (%p145) target = $region28
        $region27: #{tpu_custom_call.1} parent=23 // pred_region
          %p148 = scmp.lt.s32.totalorder %s19, 1
          %s149 = scalar_select %p148, %s19, 1
          %s150 = smul.addr %s149, 4
          %s151 = smul.addr %s150, 8
          %s152 = scalar_lea.vmem %s0, %s151
        $region28: #{tpu_custom_call.1} parent=23 // pred_fallthru
          _
      $region24: #{tpu_custom_call.1} parent=5 // pred_fallthru
        _
      %p153 = scmp.le.s32.totalorder 1, %s12
      %p154 = scmp.lt.s32.totalorder %s12, 7
      %p155 = pnand %p153, %p154
      %p156 = pneg %p155
      // Predicated region
      $region29: #{tpu_custom_call.1} parent=5 // pred_check
        _
      $region30: #{tpu_custom_call.1} parent=5 // pred_check_branch
        %158 = sbr.rel (%p155) target = $region32
      $region31: #{tpu_custom_call.1} parent=5 // pred_region
        %s159 = ssub.s32 %s12, 1
        %p160 = scmp.lt.s32.totalorder %s21, 1
        %s161 = scalar_select %p160, %s21, 1
        %s162 = smul.addr %s161, 4
        %s163 = smul.addr %s162, 8
        %s164 = scalar_lea.vmem %s0, %s163
        %p165 = pneg %p50
        %p166 = pneg %p47
        %p167 = pneg %p71
        %p168 = pneg %p68
        %p169 = pneg %p92
        %p170 = pneg %p89
        %p171 = pneg %p120
        %p172 = pneg %p117
        %s173 = sand.u32 %s107, 1
        %s174 = scalar_lea.sflag [#allocation3], %s173
        %s175 = sand.u32 %s107, 1
        %s176 = smul.addr %s175, 8
        %s177 = scalar_lea.vmem [#allocation2], %s176
        %p178 = scmp.lt.s32.totalorder %s21, 1
        %s179 = scalar_select %p178, %s21, 1
        %s180 = smul.addr %s179, 4
        %s181 = smul.addr %s180, 8
        %s182 = scalar_lea.vmem %s0, %s181
        %s183 = smul.u32 %s22, 8
        %s184 = scalar_lea.vmem %s182, %s183
        %v185 = vld [vmem:[%s184] sm:$0xff]
        %s186 = sadd.s32 %s183, 1
        %s187 = scalar_lea.vmem %s182, %s186
        %v188 = vld [vmem:[%s187] sm:$0xff]
        %s189 = sadd.s32 %s183, 2
        %s190 = scalar_lea.vmem %s182, %s189
        %v191 = vld [vmem:[%s190] sm:$0xff]
        %193 = vrot.lane.b32.xlu0 %v188, 32
        %v194 = vpop.permute.xlu0 %193
        %197 = vrot.lane.b32.xlu0 %v191, 64
        %v198 = vpop.permute.xlu0 %197
        %vm200 = vcmask 261120
        %v201 = vsel %vm200, %v185, %v194
        %vm202 = vcmask 523264
        %v203 = vsel %vm202, %v201, %v198
        %v204 = vld [vmem:[%s1] sm:$0xff]
        %v205 = vld [vmem:[%s1 + $0x8] sm:$0xff]
        %v206 = vld [vmem:[%s1 + $0x10] sm:$0xff]
        %v207 = vld [vmem:[%s1 + $0x18] sm:$0xff]
        %v208 = vld [vmem:[%s1 + $0x20] sm:$0xff]
        %v209 = vld [vmem:[%s1 + $0x28] sm:$0xff]
        %v210 = vld [vmem:[%s1 + $0x30] sm:$0xff]
        %v211 = vld [vmem:[%s1 + $0x38] sm:$0xff]
        %v212 = vld [vmem:[%s1 + $0x40] sm:$0xff]
        %v213 = vld [vmem:[%s1 + $0x48] sm:$0xff]
        %v214 = vld [vmem:[%s1 + $0x50] sm:$0xff]
        %v215 = vld [vmem:[%s1 + $0x58] sm:$0xff]
        %v216 = vld [vmem:[%s2] sm:$0x1]
        %v218 = vlaneseq
        %v219 = vshrl.u32 %v218, 7
        %v220 = vsub.s32 0, %v219
        %v221 = vrot.slane %v216, %v220
        %vm223 = vcmask 785408
        %v225 = vsel %vm223, %v203, 0
        %227 = vmatprep.subr.mxu0 0.0
        %228 = vmatpush1.msra.mxu0 %v204
        %229 = vmatprep.subr.mxu0 0.0
        %230 = vmatpush1.msra.mxu0 %v205
        %231 = vmatprep.subr.mxu0 0.0
        %232 = vmatpush1.msra.mxu0 %v206
        %233 = vmatprep.subr.mxu0 0.0
        %234 = vmatpush1.msra.mxu0 %v207
        %235 = vmatprep.subr.mxu0 0.0
        %236 = vmatpush1.msra.mxu0 %v208
        %237 = vmatprep.subr.mxu0 0.0
        %238 = vmatpush1.msra.mxu0 %v209
        %239 = vmatprep.subr.mxu0 0.0
        %240 = vmatpush1.msra.mxu0 %v210
        %241 = vmatprep.subr.mxu0 0.0
        %242 = vmatpush1.msra.mxu0 %v211
        %243 = vmatprep.subr.mxu0 0.0
        %244 = vmatpush1.msra.mxu0 %v212
        %245 = vmatprep.subr.mxu0 0.0
        %246 = vmatpush1.msra.mxu0 %v213
        %247 = vmatprep.subr.mxu0 0.0
        %248 = vmatpush1.msra.mxu0 %v214
        %249 = vmatprep.subr.mxu0 0.0
        %250 = vmatpush1.msra.mxu0 %v215
        %251 = vmatprep.subr.mxu0 0.0
        %252 = vmatpush1.msra.mxu0 0.0
        %253 = vmatprep.subr.mxu0 0.0
        %254 = vmatpush1.msra.mxu0 0.0
        %255 = vmatprep.subr.mxu0 0.0
        %256 = vmatpush1.msra.mxu0 0.0
        %257 = vmatprep.subr.mxu0 0.0
        %258 = vmatpush1.msra.mxu0 0.0
        %259 = vmatprep.subr.mxu0 0.0
        %260 = vmatpush1.msra.mxu0 0.0
        %261 = vmatprep.subr.mxu0 0.0
        %262 = vmatpush1.msra.mxu0 0.0
        %263 = vmatprep.subr.mxu0 0.0
        %264 = vmatpush1.msra.mxu0 0.0
        %265 = vmatprep.subr.mxu0 0.0
        %266 = vmatpush1.msra.mxu0 0.0
        %267 = vmatprep.subr.mxu0 0.0
        %268 = vmatpush1.msra.mxu0 0.0
        %269 = vmatprep.subr.mxu0 0.0
        %270 = vmatpush1.msra.mxu0 0.0
        %271 = vmatprep.subr.mxu0 0.0
        %272 = vmatpush1.msra.mxu0 0.0
        %273 = vmatprep.subr.mxu0 0.0
        %274 = vmatpush1.msra.mxu0 0.0
        %275 = vmatprep.subr.mxu0 0.0
        %276 = vmatpush1.msra.mxu0 0.0
        %277 = vmatprep.subr.mxu0 0.0
        %278 = vmatpush1.msra.mxu0 0.0
        %279 = vmatprep.subr.mxu0 0.0
        %280 = vmatpush1.msra.mxu0 0.0
        %281 = vmatprep.subr.mxu0 0.0
        %282 = vmatpush1.msra.mxu0 0.0
        %283 = vmatprep.subr.mxu0 0.0
        %284 = vmatpush1.msra.mxu0 0.0
        %285 = vmatprep.subr.mxu0 0.0
        %286 = vmatpush1.msra.mxu0 0.0
        %287 = vmatprep.subr.mxu0 0.0
        %288 = vmatpush1.msra.mxu0 0.0
        %289 = vmatprep.subr.mxu0 0.0
        %290 = vmatpush1.msra.mxu0 0.0
        %291 = vmatprep.mubr.f32.mxu0 0.0
        %292 = vmatmul.mubr.f32.gmra.mrb[0].mxu0 %v225
        %v293 = vpop.f32.mrb[0].mxu0
        %v294 = vadd.f32 %v221, %v293
        %v295 = vpop.f32.mrb[0].mxu0
        %296 = vdwg.mxu0
        %vm297 = vcmask 392192
        %298 = vst.msk [vmem:[%s177] sm:$0xff] %vm297, %v294
        %s299 = sand.u32 %s107, 1
        %s300 = scalar_lea.sflag [#allocation3], %s299
        %s301 = sand.u32 %s107, 1
        %s302 = smul.addr %s301, 8
        %s303 = scalar_lea.vmem [#allocation2], %s302
        // Predicated region
        $region33: #{tpu_custom_call.1} parent=31 // pred_check
          %p304 = pneg %p117
        $region34: #{tpu_custom_call.1} parent=31 // pred_check_branch
          %306 = sbr.rel (%p304) target = $region36
        $region35: #{tpu_custom_call.1} parent=31 // pred_region
          %s308 = ssub.s32 128, 128
          %309 = vsyncadd %s300, %s308
          %s310 = smul.addr %s21, 3
          %s311 = sadd.s32 %s22, %s310
          %s312 = smul.addr %s311, 128
          %s313 = scalar_lea.hbm %s3, %s312
          %s315 = sshll.u32 %s303, 4
          %s316 = int_to_ptr.vmem [resolvable:$true] %s315
          %318 = dma.vmem_to_hbm [thread:$0]  %s316, 128, %s313, %s300
        $region36: #{tpu_custom_call.1} parent=31 // pred_fallthru
          _
      $region32: #{tpu_custom_call.1} parent=5 // pred_fallthru
        _
      %p319 = scmp.le.s32.totalorder 2, %s12
      // Predicated region
      $region37: #{tpu_custom_call.1} parent=5 // pred_check
        %p320 = pneg %p319
      $region38: #{tpu_custom_call.1} parent=5 // pred_check_branch
        %322 = sbr.rel (%p320) target = $region40
      $region39: #{tpu_custom_call.1} parent=5 // pred_region
        %s323 = ssub.s32 %s12, 2
        // Predicated region
        $region41: #{tpu_custom_call.1} parent=39 // pred_check
          %p324 = pneg %p123
        $region42: #{tpu_custom_call.1} parent=39 // pred_check_branch
          %326 = sbr.rel (%p324) target = $region44
        $region43: #{tpu_custom_call.1} parent=39 // pred_region
          %s327 = sand.u32 %s108, 1
          %s328 = scalar_lea.sflag [#allocation3], %s327
          %s329 = sand.u32 %s108, 1
          %s330 = smul.addr %s329, 8
          %s331 = scalar_lea.vmem [#allocation2], %s330
          %332 = dma.done %s328, 128
        $region44: #{tpu_custom_call.1} parent=39 // pred_fallthru
          _
      $region40: #{tpu_custom_call.1} parent=5 // pred_fallthru
        _
    $region6: #{tpu_custom_call.1} parent=1 // loop_footer
      %s16 = sadd.s32 1, %s12
    $region7: #{tpu_custom_call.1} parent=1 // loop_footer_branch
      %11 = sbr.rel target = $region3
    $region8: #{tpu_custom_call.1} parent=1 // loop_exit
      _
    %333 = vsyncpa [#allocation3], 1
    %s334 = scalar_lea.sflag [#allocation3], 1
    %335 = vsyncpa %s334, 1

</llo_original>
